<compile_context>
chip_gen: v7x
topology: tpu7x:2x2x1
jax: 0.10.0
libtpu: 0.0.40
codegen_flags: <defaults>
</compile_context>

<pallas_src>
import jax
import jax.numpy as jnp
from jax.experimental import pallas as pl
from jax.experimental.pallas import tpu as pltpu


def _round_up(x, m):
    return ((x + m - 1) // m) * m


def _lora_kernel(alpha_ref, x_ref, a_ref, b_ref, o_ref):
    # x: (tm, in_dim)  a: (in_dim, rank)  b: (rank, out_pad)  o: (tm, out_pad)
    alpha = alpha_ref[0, 0]
    # First matmul: contract over in_dim on the MXU, f32 accumulation.
    xa = jnp.dot(x_ref[...], a_ref[...], preferred_element_type=jnp.float32)
    # Scale the tiny (tm, rank) intermediate instead of the (tm, out_dim)
    # output: out_dim/rank fewer VPU multiplies per grid step.
    xa = xa * alpha
    # Second matmul contracts over rank (latency-bound at tiny rank); a large
    # tm amortizes the MXU push/drain. Keep f32 accumulation, cast on store.
    y = jnp.dot(xa.astype(b_ref.dtype), b_ref[...],
                preferred_element_type=jnp.float32)
    o_ref[...] = y.astype(o_ref.dtype)


def lora_forward(x, A, B, alpha, *, tm=256):
    M, in_dim = x.shape
    rank, out_dim = B.shape
    assert A.shape == (in_dim, rank)
    dtype = x.dtype
    itemsize = jnp.dtype(dtype).itemsize

    # ---- TPU-friendly padding / tile selection -----------------------------
    # Batch tile: multiple of 8 sublanes, clamped to the (padded) batch size.
    tm = max(8, min(tm, _round_up(M, 8)))
    m_pad = _round_up(M, tm)
    # Lane-dense output: pad out_dim to a multiple of 128 (unmasked stores).
    out_pad = _round_up(out_dim, 128)

    x_p = x if m_pad == M else jnp.pad(x, ((0, m_pad - M), (0, 0)))
    B_p = B if out_pad == out_dim else jnp.pad(B, ((0, 0), (0, out_pad - out_dim)))

    # alpha as a (1,1) SMEM scalar: one sld per step, no recompile per value.
    alpha_arr = jnp.asarray(alpha, dtype=jnp.float32).reshape(1, 1)

    grid = (m_pad // tm,)

    # Double-buffered streaming x/y tiles + resident A/B; only raise the
    # scoped-VMEM limit if the tiles actually need it (headroom vs v7x 64 MiB).
    stream_bytes = 2 * (tm * in_dim + tm * out_pad) * itemsize
    resident_bytes = (in_dim * rank + rank * out_pad) * itemsize
    vmem_limit = None
    if stream_bytes + resident_bytes > (24 << 20):
        vmem_limit = min(stream_bytes + resident_bytes + (8 << 20), 60 << 20)

    cost = pl.CostEstimate(
        flops=2 * m_pad * in_dim * rank + 2 * m_pad * rank * out_pad,
        transcendentals=0,
        bytes_accessed=(m_pad * in_dim + in_dim * rank
                        + rank * out_pad + m_pad * out_pad) * itemsize,
    )

    out = pl.pallas_call(
        _lora_kernel,
        out_shape=jax.ShapeDtypeStruct((m_pad, out_pad), dtype),
        grid=grid,
        in_specs=[
            pl.BlockSpec(memory_space=pltpu.MemorySpace.SMEM),   # alpha (1,1)
            pl.BlockSpec((tm, in_dim), lambda i: (i, 0)),        # x tile (streamed)
            pl.BlockSpec((in_dim, rank), lambda i: (0, 0)),      # A (resident)
            pl.BlockSpec((rank, out_pad), lambda i: (0, 0)),     # B (resident)
        ],
        out_specs=pl.BlockSpec((tm, out_pad), lambda i: (i, 0)),
        compiler_params=pltpu.CompilerParams(
            dimension_semantics=("parallel",),  # row-parallel: megacore on v7x
            vmem_limit_bytes=vmem_limit,
        ),
        cost_estimate=cost,
    )(alpha_arr, x_p, A, B_p)

    return out[:M, :out_dim]


if __name__ == "__main__":
    # Small demo shapes consistent with the module: batch=8, in_dim=32,
    # rank=4, out_dim=32. (At shapes this tiny, plain XLA dots would beat any
    # Pallas kernel on launch overhead; the kernel is built for real LoRA
    # sizes where M is thousands and in/out dims are 2-8K.)
    batch, in_dim, rank, out_dim = 8, 32, 4, 32
    alpha = 2.0

    key = jax.random.PRNGKey(0)
    kx, ka, kb = jax.random.split(key, 3)

    x = jax.random.normal(kx, (batch, in_dim), dtype=jnp.float32)
    # A ~ randn * 1/sqrt(rank), matching the module's init.
    A = jax.random.normal(ka, (in_dim, rank), dtype=jnp.float32) / jnp.sqrt(
        jnp.float32(rank)
    )
    # The module inits B to zeros (trivially-zero output); use small random
    # values instead so the kernel compute path is actually exercised.
    B = 0.1 * jax.random.normal(kb, (rank, out_dim), dtype=jnp.float32)

    y = jax.block_until_ready(lora_forward(x, A, B, alpha))

    # Pure-JAX reference check.
    y_ref = alpha * (x @ A @ B)
    assert y.shape == (batch, out_dim)
    assert jnp.allclose(y, y_ref, atol=1e-5, rtol=1e-5)

    print("KERNEL_OK")
</pallas_src>

<mosaic_0001>
module attributes {stable_mosaic.version = 11 : i64} {
  func.func @_lora_kernel(%arg0: i32, %arg1: memref<1x1xf32, #tpu.memory_space<smem>>, %arg2: memref<8x32xf32, #tpu.memory_space<vmem>>, %arg3: memref<32x4xf32, #tpu.memory_space<vmem>>, %arg4: memref<4x128xf32, #tpu.memory_space<vmem>>, %arg5: memref<8x128xf32, #tpu.memory_space<vmem>>) attributes {dimension_semantics = [#tpu.dimension_semantics<parallel>], iteration_bounds = array<i64: 1>, scalar_prefetch = 0 : i64, scratch_operands = 0 : i64, tpu.core_type = #tpu.core_type<tc>, window_params = [{transform_indices = @transform_0, window_bounds = array<i64: 1, 1>}, {transform_indices = @transform_1, window_bounds = array<i64: 8, 32>}, {pipeline_mode = #tpu.pipeline_mode<synchronous>, transform_indices = @transform_2, window_bounds = array<i64: 32, 4>}, {pipeline_mode = #tpu.pipeline_mode<synchronous>, transform_indices = @transform_3, window_bounds = array<i64: 4, 128>}, {transform_indices = @transform_4, window_bounds = array<i64: 8, 128>}]} {
    %c0 = arith.constant 0 : index
    %c0_0 = arith.constant 0 : index
    %0 = memref.load %arg1[%c0, %c0_0] : memref<1x1xf32, #tpu.memory_space<smem>>
    %c0_1 = arith.constant 0 : index
    %c0_2 = arith.constant 0 : index
    %1 = vector.load %arg2[%c0_1, %c0_2] : memref<8x32xf32, #tpu.memory_space<vmem>>, vector<8x32xf32>
    %c0_3 = arith.constant 0 : index
    %c0_4 = arith.constant 0 : index
    %2 = vector.load %arg3[%c0_3, %c0_4] : memref<32x4xf32, #tpu.memory_space<vmem>>, vector<32x4xf32>
    %cst = arith.constant dense<0.000000e+00> : vector<8x4xf32>
    %3 = tpu.matmul %1, %2, %cst {dimension_numbers = #tpu.dot_dimension_numbers<[1], [0], [0], [1], [0, 0, 1, 1], [], []>} : vector<8x32xf32>, vector<32x4xf32>, vector<8x4xf32> -> vector<8x4xf32>
    %4 = vector.broadcast %0 : f32 to vector<8x4xf32>
    %5 = arith.mulf %3, %4 : vector<8x4xf32>
    %c0_5 = arith.constant 0 : index
    %c0_6 = arith.constant 0 : index
    %6 = vector.load %arg4[%c0_5, %c0_6] : memref<4x128xf32, #tpu.memory_space<vmem>>, vector<4x128xf32>
    %cst_7 = arith.constant dense<0.000000e+00> : vector<8x128xf32>
    %7 = tpu.matmul %5, %6, %cst_7 {dimension_numbers = #tpu.dot_dimension_numbers<[1], [0], [0], [1], [0, 0, 1, 1], [], []>} : vector<8x4xf32>, vector<4x128xf32>, vector<8x128xf32> -> vector<8x128xf32>
    %c0_8 = arith.constant 0 : index
    %c0_9 = arith.constant 0 : index
    %8 = vector.load %arg5[%c0_8, %c0_9] : memref<8x128xf32, #tpu.memory_space<vmem>>, vector<8x128xf32>
    tpu.vector_store %arg5[%c0_8, %c0_9], %7 {strides = array<i32>} : memref<8x128xf32, #tpu.memory_space<vmem>>, vector<8x128xf32>,
    return
  }
  func.func @transform_0(%arg0: i32) -> (i32, i32) {
    %c0_i32 = arith.constant 0 : i32
    %c0_i32_0 = arith.constant 0 : i32
    %c0_i32_1 = arith.constant 0 : i32
    return %c0_i32, %c0_i32_0 : i32, i32
  }
  func.func @transform_1(%arg0: i32) -> (i32, i32) {
    %c0_i32 = arith.constant 0 : i32
    %c0_i32_0 = arith.constant 0 : i32
    return %arg0, %c0_i32 : i32, i32
  }
  func.func @transform_2(%arg0: i32) -> (i32, i32) {
    %c0_i32 = arith.constant 0 : i32
    %c0_i32_0 = arith.constant 0 : i32
    %c0_i32_1 = arith.constant 0 : i32
    return %c0_i32, %c0_i32_0 : i32, i32
  }
  func.func @transform_3(%arg0: i32) -> (i32, i32) {
    %c0_i32 = arith.constant 0 : i32
    %c0_i32_0 = arith.constant 0 : i32
    %c0_i32_1 = arith.constant 0 : i32
    return %c0_i32, %c0_i32_0 : i32, i32
  }
  func.func @transform_4(%arg0: i32) -> (i32, i32) {
    %c0_i32 = arith.constant 0 : i32
    %c0_i32_0 = arith.constant 0 : i32
    return %arg0, %c0_i32 : i32, i32
  }
}

</mosaic_0001>

<llo_original>
// kernel: tpu_custom_call.1
$region0: #{tpu_custom_call.1}
  #allocation0 [shape = 'u32[]', space=smem, size = 0x4, offset = 0x4, fixed_abs, tag = 'smem constant byte address 0x4 - core index']
  #allocation1 [shape = 'u32[144,128]{1,0:T(1,128)}', space=vmem, size = 0x12000, scoped, tag = 'internal scratch']
  #allocation2 [shape = 'f32[1,1]{1,0:T(1,128)S(6)}', space=smem, size = 0x200, scoped, tag = 'scoped memory for tpu_custom_call.1']
  %s0 = inlined_call_operand.<no memory space> [shape: f32[1,1], index: 0, kind: input, shape index: {}]
  %s1 = inlined_call_operand.vmem [shape: f32[8,32], index: 1, kind: input, shape index: {}]
  %s2 = inlined_call_operand.vmem [shape: f32[32,4], index: 2, kind: input, shape index: {}]
  %s3 = inlined_call_operand.vmem [shape: f32[4,128], index: 3, kind: input, shape index: {}]
  %s4 = inlined_call_operand.hbm [shape: f32[8,128], index: 4, kind: output, shape index: {}]
  %s5 = sld [smem:[#allocation0]]
  $region26: #{tpu_custom_call.1} parent=0
    _
  %s7 = ssub.s32 1, %s5
  %s8 = scalar_select 0, %s7, %s5
  %9 = sst [smem:[#allocation2]] %s0
  $region1: #{tpu_custom_call.1} parent=0
    #allocation3 [shape = 'u8[4096]{0}', space=vmem, size = 0x1000, scoped, tag = 'output window, operand 0, single buffered']
    #allocation4 [shape = 's32[1]{0}', space=sflag, size = 0x4, scoped, tag = 'scoped memory for tpu_custom_call.1']
    %10 = vsyncpa [#allocation4], 0
    // Predicated region
    $region2: #{tpu_custom_call.1} parent=1 // pred_check
      _
    $region3: #{tpu_custom_call.1} parent=1 // pred_check_branch
      %12 = sbr.rel (0) target = $region5
    $region4: #{tpu_custom_call.1} parent=1 // pred_region
      _
    $region5: #{tpu_custom_call.1} parent=1 // pred_fallthru
      _
    // Predicated region
    $region6: #{tpu_custom_call.1} parent=1 // pred_check
      _
    $region7: #{tpu_custom_call.1} parent=1 // pred_check_branch
      %14 = sbr.rel (0) target = $region9
    $region8: #{tpu_custom_call.1} parent=1 // pred_region
      _
    $region9: #{tpu_custom_call.1} parent=1 // pred_fallthru
      _
    // Predicated region
    $region10: #{tpu_custom_call.1} parent=1 // pred_check
      _
    $region11: #{tpu_custom_call.1} parent=1 // pred_check_branch
      %16 = sbr.rel (0) target = $region13
    $region12: #{tpu_custom_call.1} parent=1 // pred_region
      _
    $region13: #{tpu_custom_call.1} parent=1 // pred_fallthru
      _
    // Predicated region
    $region14: #{tpu_custom_call.1} parent=1 // pred_check
      _
    $region15: #{tpu_custom_call.1} parent=1 // pred_check_branch
      %18 = sbr.rel (0) target = $region17
    $region16: #{tpu_custom_call.1} parent=1 // pred_region
      _
    $region17: #{tpu_custom_call.1} parent=1 // pred_fallthru
      _
    %s19 = sld [smem:[#allocation2]]
    %v20 = vld [vmem:[%s1] sm:$0xff]
    %v21 = vld [vmem:[%s2] sm:$0xff]
    %v22 = vld [vmem:[%s2 + $0x8] sm:$0xff]
    %v23 = vld [vmem:[%s2 + $0x10] sm:$0xff]
    %v24 = vld [vmem:[%s2 + $0x18] sm:$0xff]
    %vm25 = vcmask 261120
    %v27 = vsel %vm25, %v20, 0
    %29 = vmatprep.subr.mxu0 0.0
    %30 = vmatpush1.msra.mxu0 %v21
    %31 = vmatprep.subr.mxu0 0.0
    %32 = vmatpush1.msra.mxu0 %v22
    %33 = vmatprep.subr.mxu0 0.0
    %34 = vmatpush1.msra.mxu0 %v23
    %35 = vmatprep.subr.mxu0 0.0
    %36 = vmatpush1.msra.mxu0 %v24
    %37 = vmatprep.subr.mxu0 0.0
    %38 = vmatpush1.msra.mxu0 0.0
    %39 = vmatprep.subr.mxu0 0.0
    %40 = vmatpush1.msra.mxu0 0.0
    %41 = vmatprep.subr.mxu0 0.0
    %42 = vmatpush1.msra.mxu0 0.0
    %43 = vmatprep.subr.mxu0 0.0
    %44 = vmatpush1.msra.mxu0 0.0
    %45 = vmatprep.subr.mxu0 0.0
    %46 = vmatpush1.msra.mxu0 0.0
    %47 = vmatprep.subr.mxu0 0.0
    %48 = vmatpush1.msra.mxu0 0.0
    %49 = vmatprep.subr.mxu0 0.0
    %50 = vmatpush1.msra.mxu0 0.0
    %51 = vmatprep.subr.mxu0 0.0
    %52 = vmatpush1.msra.mxu0 0.0
    %53 = vmatprep.subr.mxu0 0.0
    %54 = vmatpush1.msra.mxu0 0.0
    %55 = vmatprep.subr.mxu0 0.0
    %56 = vmatpush1.msra.mxu0 0.0
    %57 = vmatprep.subr.mxu0 0.0
    %58 = vmatpush1.msra.mxu0 0.0
    %59 = vmatprep.subr.mxu0 0.0
    %60 = vmatpush1.msra.mxu0 0.0
    %61 = vmatprep.subr.mxu0 0.0
    %62 = vmatpush1.msra.mxu0 0.0
    %63 = vmatprep.subr.mxu0 0.0
    %64 = vmatpush1.msra.mxu0 0.0
    %65 = vmatprep.subr.mxu0 0.0
    %66 = vmatpush1.msra.mxu0 0.0
    %67 = vmatprep.subr.mxu0 0.0
    %68 = vmatpush1.msra.mxu0 0.0
    %69 = vmatprep.subr.mxu0 0.0
    %70 = vmatpush1.msra.mxu0 0.0
    %71 = vmatprep.subr.mxu0 0.0
    %72 = vmatpush1.msra.mxu0 0.0
    %73 = vmatprep.subr.mxu0 0.0
    %74 = vmatpush1.msra.mxu0 0.0
    %75 = vmatprep.subr.mxu0 0.0
    %76 = vmatpush1.msra.mxu0 0.0
    %77 = vmatprep.subr.mxu0 0.0
    %78 = vmatpush1.msra.mxu0 0.0
    %79 = vmatprep.subr.mxu0 0.0
    %80 = vmatpush1.msra.mxu0 0.0
    %81 = vmatprep.subr.mxu0 0.0
    %82 = vmatpush1.msra.mxu0 0.0
    %83 = vmatprep.subr.mxu0 0.0
    %84 = vmatpush1.msra.mxu0 0.0
    %85 = vmatprep.subr.mxu0 0.0
    %86 = vmatpush1.msra.mxu0 0.0
    %87 = vmatprep.subr.mxu0 0.0
    %88 = vmatpush1.msra.mxu0 0.0
    %89 = vmatprep.subr.mxu0 0.0
    %90 = vmatpush1.msra.mxu0 0.0
    %91 = vmatprep.subr.mxu0 0.0
    %92 = vmatpush1.msra.mxu0 0.0
    %93 = vmatprep.mubr.f32.mxu0 0.0
    %94 = vmatmul.mubr.f32.gmra.mrb[0].mxu0 %v27
    %v95 = vpop.f32.mrb[0].mxu0
    %v96 = vadd.f32 0.0, %v95
    %v97 = vpop.f32.mrb[0].mxu0
    %98 = vdwg.mxu0
    %v99 = vstv %s19
    %v100 = vmul.f32 %v96, %v99
    %v101 = vld [vmem:[%s3] sm:$0xf]
    %vm102 = vcmask 31744
    %v104 = vsel %vm102, %v100, 0
    %vm106 = vcmask 1043456
    %v108 = vsel %vm106, %v101, 0
    %110 = vmatprep.subr.mxu0 0.0
    %111 = vmatpush1.msra.mxu0 %v108
    %112 = vmatprep.subr.mxu0 0.0
    %113 = vmatpush1.msra.mxu0 0.0
    %114 = vmatprep.subr.mxu0 0.0
    %115 = vmatpush1.msra.mxu0 0.0
    %116 = vmatprep.subr.mxu0 0.0
    %117 = vmatpush1.msra.mxu0 0.0
    %118 = vmatprep.subr.mxu0 0.0
    %119 = vmatpush1.msra.mxu0 0.0
    %120 = vmatprep.subr.mxu0 0.0
    %121 = vmatpush1.msra.mxu0 0.0
    %122 = vmatprep.subr.mxu0 0.0
    %123 = vmatpush1.msra.mxu0 0.0
    %124 = vmatprep.subr.mxu0 0.0
    %125 = vmatpush1.msra.mxu0 0.0
    %126 = vmatprep.subr.mxu0 0.0
    %127 = vmatpush1.msra.mxu0 0.0
    %128 = vmatprep.subr.mxu0 0.0
    %129 = vmatpush1.msra.mxu0 0.0
    %130 = vmatprep.subr.mxu0 0.0
    %131 = vmatpush1.msra.mxu0 0.0
    %132 = vmatprep.subr.mxu0 0.0
    %133 = vmatpush1.msra.mxu0 0.0
    %134 = vmatprep.subr.mxu0 0.0
    %135 = vmatpush1.msra.mxu0 0.0
    %136 = vmatprep.subr.mxu0 0.0
    %137 = vmatpush1.msra.mxu0 0.0
    %138 = vmatprep.subr.mxu0 0.0
    %139 = vmatpush1.msra.mxu0 0.0
    %140 = vmatprep.subr.mxu0 0.0
    %141 = vmatpush1.msra.mxu0 0.0
    %142 = vmatprep.subr.mxu0 0.0
    %143 = vmatpush1.msra.mxu0 0.0
    %144 = vmatprep.subr.mxu0 0.0
    %145 = vmatpush1.msra.mxu0 0.0
    %146 = vmatprep.subr.mxu0 0.0
    %147 = vmatpush1.msra.mxu0 0.0
    %148 = vmatprep.subr.mxu0 0.0
    %149 = vmatpush1.msra.mxu0 0.0
    %150 = vmatprep.subr.mxu0 0.0
    %151 = vmatpush1.msra.mxu0 0.0
    %152 = vmatprep.subr.mxu0 0.0
    %153 = vmatpush1.msra.mxu0 0.0
    %154 = vmatprep.subr.mxu0 0.0
    %155 = vmatpush1.msra.mxu0 0.0
    %156 = vmatprep.subr.mxu0 0.0
    %157 = vmatpush1.msra.mxu0 0.0
    %158 = vmatprep.subr.mxu0 0.0
    %159 = vmatpush1.msra.mxu0 0.0
    %160 = vmatprep.subr.mxu0 0.0
    %161 = vmatpush1.msra.mxu0 0.0
    %162 = vmatprep.subr.mxu0 0.0
    %163 = vmatpush1.msra.mxu0 0.0
    %164 = vmatprep.subr.mxu0 0.0
    %165 = vmatpush1.msra.mxu0 0.0
    %166 = vmatprep.subr.mxu0 0.0
    %167 = vmatpush1.msra.mxu0 0.0
    %168 = vmatprep.subr.mxu0 0.0
    %169 = vmatpush1.msra.mxu0 0.0
    %170 = vmatprep.subr.mxu0 0.0
    %171 = vmatpush1.msra.mxu0 0.0
    %172 = vmatprep.subr.mxu0 0.0
    %173 = vmatpush1.msra.mxu0 0.0
    %174 = vmatprep.mubr.f32.mxu0 0.0
    %175 = vmatmul.mubr.f32.gmra.mrb[0].mxu0 %v104
    %v176 = vpop.f32.mrb[0].mxu0
    %v177 = vadd.f32 0.0, %v176
    %v178 = vpop.f32.mrb[0].mxu0
    %179 = vdwg.mxu0
    %180 = vst [vmem:[#allocation3] sm:$0xff] %v177
    // Predicated region
    $region18: #{tpu_custom_call.1} parent=1 // pred_check
      _
    $region19: #{tpu_custom_call.1} parent=1 // pred_check_branch
      %182 = sbr.rel (0) target = $region21
    $region20: #{tpu_custom_call.1} parent=1 // pred_region
      %s184 = ssub.s32 128, 128
      %185 = vsyncadd [#allocation4], %s184
      %s187 = sshll.u32 [#allocation3], 4
      %s188 = int_to_ptr.vmem [resolvable:$true] %s187
      %190 = dma.vmem_to_hbm [thread:$0]  %s188, 128, %s4, [#allocation4]
    $region21: #{tpu_custom_call.1} parent=1 // pred_fallthru
      _
    // Predicated region
    $region22: #{tpu_custom_call.1} parent=1 // pred_check
      _
    $region23: #{tpu_custom_call.1} parent=1 // pred_check_branch
      %192 = sbr.rel (0) target = $region25
    $region24: #{tpu_custom_call.1} parent=1 // pred_region
      %193 = dma.done [#allocation4], 128
    $region25: #{tpu_custom_call.1} parent=1 // pred_fallthru
      _
    %194 = vsyncpa [#allocation4], 1

</llo_original>
